<compile_context>
chip_gen: v7x
topology: tpu7x:2x2x1
jax: 0.10.0
libtpu: 0.0.40
codegen_flags: <defaults>
</compile_context>

<pallas_src>
import functools

import jax
import jax.numpy as jnp
from jax.experimental import pallas as pl
from jax.experimental.pallas import tpu as pltpu


def _drop_path_kernel(x_ref, scale_ref, o_ref, *, compute_dtype):
    """x_ref/o_ref: (bs, tr, C) VMEM tiles; scale_ref: (bs, 1, 1) f32 VMEM.

    scale is 0.0 for dropped samples and 1/keep_prob for kept samples; the
    multiply broadcasts the per-sample scalar over the (tr, C) tile.
    """
    s = scale_ref[...].astype(compute_dtype)                       # (bs, 1, 1)
    o_ref[...] = (x_ref[...].astype(compute_dtype) * s).astype(o_ref.dtype)


def _round_up(n, m):
    return ((n + m - 1) // m) * m


def _chip_gen():
    """Coarse TPU generation detection for tile-budget / dtype gating."""
    try:
        kind = jax.devices()[0].device_kind.lower()
    except Exception:
        return "unknown"
    for g in ("v7", "v6", "v5"):
        if g in kind:
            return g
    return "unknown"


def drop_path(x, drop_prob: float, training: bool, key):
    """Pallas implementation of drop_path.  x: (B, ...)."""
    if drop_prob == 0.0 or not training:
        return x
    if drop_prob >= 1.0:
        # timm reference divides by keep_prob == 0 (NaN); zeros is the only
        # sensible output for "drop every path".
        return jnp.zeros_like(x)

    keep_prob = 1.0 - drop_prob
    orig_shape = x.shape
    B = int(orig_shape[0])

    # Per-sample binary keep mask (glue, negligible work): floor(keep_prob + U[0,1))
    # exactly mirrors the PyTorch binarization.  Pre-fold the 1/keep_prob scale.
    u = jax.random.uniform(key, (B,), dtype=jnp.float32)
    scale = jnp.floor(keep_prob + u) * jnp.float32(1.0 / keep_prob)  # 0 or 1/keep_prob
    scale3 = scale.reshape(B, 1, 1)

    # ---- lane-dense (B, R, C) view ------------------------------------------
    per_sample = 1
    for s in orig_shape[1:]:
        per_sample *= int(s)
    if per_sample == 0:
        return x
    last = int(orig_shape[-1]) if len(orig_shape) > 1 else 1
    R = per_sample // last
    C = last
    # Only leading dims are merged (layout-friendly); the last dim is kept and,
    # if not lane-dense, zero-padded to a multiple of 128 so stores are unmasked.
    # TODO(synk): for >3-D inputs whose second-to-last dim is not a multiple of
    # the sublane tile, XLA may still insert a relayout copy around the reshape;
    # verify the HLO if such a shape ever gets hot.
    x3 = x.reshape(B, R, C)
    Cp = _round_up(max(C, 1), 128)
    if Cp != C:
        # TODO(synk): pad + slice cost one extra wrapper copy each; still cheaper
        # than masked partial stores for typical shapes, but fuse upstream if hot.
        x3 = jnp.pad(x3, ((0, 0), (0, 0), (0, Cp - C)))

    # ---- generation-aware tiling ---------------------------------------------
    itemsize = jnp.dtype(x.dtype).itemsize
    pack = max(8, 32 // itemsize)             # sublane packing: 8 f32, 16 bf16, 32 int8
    gen = _chip_gen()
    if gen == "v7":
        target_bytes = 8 << 20                # 32 MiB live (2 bufs x in+out); 64 MiB physical
        vmem_limit = 48 << 20
    elif gen == "v6":
        target_bytes = 4 << 20                # 16 MiB live < 32 MiB scoped default
        vmem_limit = None
    else:                                     # v5e or unknown: stay under 16 MiB scoped default
        target_bytes = 2 << 20
        vmem_limit = None

    sample_bytes = R * Cp * itemsize
    if sample_bytes >= target_bytes:
        # One sample per tile; tile the row axis to the target budget.
        bs = 1
        if R <= pack:
            tr = R
        else:
            tr = max(1, target_bytes // max(1, Cp * itemsize))
            tr = max(pack, (tr // pack) * pack)   # multiple of the sublane pack
            tr = min(tr, R)
    else:
        # Pack several samples per tile so the ~0.35 us/step overhead amortizes.
        tr = R
        bs = max(1, min(B, target_bytes // max(1, sample_bytes)))

    grid = (pl.cdiv(B, bs), pl.cdiv(R, tr))

    # bf16 VALU exists on v6e/v7x; v5e (and unknown chips) upcast to f32.
    if x.dtype == jnp.bfloat16 and gen in ("v6", "v7"):
        compute_dtype = jnp.bfloat16
    else:
        compute_dtype = jnp.float32

    # TODO(synk): input_output_aliases={0: 0} would donate x's HBM buffer to the
    # output (halves peak activation footprint); left off since the caller may
    # still hold x.
    out3 = pl.pallas_call(
        functools.partial(_drop_path_kernel, compute_dtype=compute_dtype),
        out_shape=jax.ShapeDtypeStruct((B, R, Cp), x.dtype),
        grid=grid,
        in_specs=[
            pl.BlockSpec((bs, tr, Cp), lambda b, t: (b, t, 0)),
            pl.BlockSpec((bs, 1, 1), lambda b, t: (b, 0, 0)),
        ],
        out_specs=pl.BlockSpec((bs, tr, Cp), lambda b, t: (b, t, 0)),
        compiler_params=pltpu.CompilerParams(
            dimension_semantics=("parallel", "parallel"),
            vmem_limit_bytes=vmem_limit),
    )(x3, scale3)

    if Cp != C:
        out3 = out3[:, :, :C]
    return out3.reshape(orig_shape)


class DropPath:
    """Drop paths (Stochastic Depth) per sample, applied in residual main paths."""

    def __init__(self, drop_prob: float = 0.0):
        self.drop_prob = drop_prob
        self.training = True

    def __call__(self, x, key):
        return drop_path(x, self.drop_prob, self.training, key)

    def extra_repr(self) -> str:
        return "p={}".format(self.drop_prob)


def _check_per_sample(out, x, keep_prob, rtol, atol):
    ref_kept = x.astype(jnp.float32) / keep_prob
    for b in range(x.shape[0]):
        ob = out[b].astype(jnp.float32)
        ok_zero = bool(jnp.allclose(ob, 0.0))
        ok_kept = bool(jnp.allclose(ob, ref_kept[b], rtol=rtol, atol=atol))
        assert ok_zero or ok_kept, f"sample {b} neither dropped nor correctly scaled"


if __name__ == "__main__":
    key = jax.random.PRNGKey(0)
    k_x1, k_x2, k_x3, k_d1, k_d2, k_d3 = jax.random.split(key, 6)

    module = DropPath(drop_prob=0.25)
    keep_prob = 1.0 - module.drop_prob

    # Case 1: ViT-like token tensor, lane-dense last dim (f32) — multi-sample packing.
    B, N, D = 2, 8, 128
    x1 = jax.random.normal(k_x1, (B, N, D), dtype=jnp.float32)
    module.training = True
    out1 = jax.block_until_ready(module(x1, k_d1))
    assert out1.shape == x1.shape
    _check_per_sample(out1, x1, keep_prob, rtol=1e-6, atol=1e-6)

    # Case 2: small non-128 last dim (bf16) — exercises the lane-padding path.
    x2 = jax.random.normal(k_x2, (2, 16, 32), dtype=jnp.bfloat16)
    out2 = jax.block_until_ready(module(x2, k_d2))
    assert out2.shape == x2.shape
    _check_per_sample(out2, x2, keep_prob, rtol=2e-2, atol=2e-2)

    # Case 3: 4-D input (B, C, H, W) — leading-dim merge + lane padding.
    x3 = jax.random.normal(k_x3, (2, 4, 16, 16), dtype=jnp.float32)
    out3 = jax.block_until_ready(module(x3, k_d3))
    assert out3.shape == x3.shape
    _check_per_sample(out3.reshape(2, -1), x3.reshape(2, -1), keep_prob,
                      rtol=1e-6, atol=1e-6)

    # Eval mode / drop_prob=0 path is identity.
    module.training = False
    out_eval = jax.block_until_ready(module(x1, k_d1))
    assert bool(jnp.array_equal(out_eval, x1))
    module.training = True
    module0 = DropPath(drop_prob=0.0)
    out_p0 = jax.block_until_ready(module0(x1, k_d1))
    assert bool(jnp.array_equal(out_p0, x1))

    # drop_prob = 1.0 returns zeros (reference would be NaN via 0 * 1/0).
    module1 = DropPath(drop_prob=1.0)
    out_p1 = jax.block_until_ready(module1(x1, k_d1))
    assert bool(jnp.allclose(out_p1, 0.0))

    print("KERNEL_OK")
</pallas_src>

<mosaic_0001>
module attributes {stable_mosaic.version = 11 : i64} {
  func.func @_drop_path_kernel(%arg0: i32, %arg1: i32, %arg2: memref<2x8x128xf32, #tpu.memory_space<vmem>>, %arg3: memref<2x1x1xf32, #tpu.memory_space<vmem>>, %arg4: memref<2x8x128xf32, #tpu.memory_space<vmem>>) attributes {dimension_semantics = [#tpu.dimension_semantics<parallel>, #tpu.dimension_semantics<parallel>], iteration_bounds = array<i64: 1, 1>, scalar_prefetch = 0 : i64, scratch_operands = 0 : i64, tpu.core_type = #tpu.core_type<tc>, window_params = [{transform_indices = @transform_0, window_bounds = array<i64: 2, 8, 128>}, {transform_indices = @transform_1, window_bounds = array<i64: 2, 1, 1>}, {transform_indices = @transform_2, window_bounds = array<i64: 2, 8, 128>}]} {
    %c0 = arith.constant 0 : index
    %c0_0 = arith.constant 0 : index
    %c0_1 = arith.constant 0 : index
    %0 = vector.load %arg3[%c0, %c0_0, %c0_1] : memref<2x1x1xf32, #tpu.memory_space<vmem>>, vector<2x1x1xf32>
    %c0_2 = arith.constant 0 : index
    %c0_3 = arith.constant 0 : index
    %c0_4 = arith.constant 0 : index
    %1 = vector.load %arg2[%c0_2, %c0_3, %c0_4] : memref<2x8x128xf32, #tpu.memory_space<vmem>>, vector<2x8x128xf32>
    %2 = vector.broadcast %0 : vector<2x1x1xf32> to vector<2x8x128xf32>
    %3 = arith.mulf %1, %2 : vector<2x8x128xf32>
    %c0_5 = arith.constant 0 : index
    %c0_6 = arith.constant 0 : index
    %c0_7 = arith.constant 0 : index
    %4 = vector.load %arg4[%c0_5, %c0_6, %c0_7] : memref<2x8x128xf32, #tpu.memory_space<vmem>>, vector<2x8x128xf32>
    tpu.vector_store %arg4[%c0_5, %c0_6, %c0_7], %3 {strides = array<i32>} : memref<2x8x128xf32, #tpu.memory_space<vmem>>, vector<2x8x128xf32>,
    return
  }
  func.func @transform_0(%arg0: i32, %arg1: i32) -> (i32, i32, i32) {
    %c0_i32 = arith.constant 0 : i32
    %c0_i32_0 = arith.constant 0 : i32
    return %arg0, %arg1, %c0_i32 : i32, i32, i32
  }
  func.func @transform_1(%arg0: i32, %arg1: i32) -> (i32, i32, i32) {
    %c0_i32 = arith.constant 0 : i32
    %c0_i32_0 = arith.constant 0 : i32
    %c0_i32_1 = arith.constant 0 : i32
    return %arg0, %c0_i32, %c0_i32_0 : i32, i32, i32
  }
  func.func @transform_2(%arg0: i32, %arg1: i32) -> (i32, i32, i32) {
    %c0_i32 = arith.constant 0 : i32
    %c0_i32_0 = arith.constant 0 : i32
    return %arg0, %arg1, %c0_i32 : i32, i32, i32
  }
}

</mosaic_0001>

<llo_original>
// kernel: tpu_custom_call.1
$region0: #{tpu_custom_call.1}
  #allocation0 [shape = 'u32[]', space=smem, size = 0x4, offset = 0x4, fixed_abs, tag = 'smem constant byte address 0x4 - core index']
  #allocation1 [shape = 'u32[144,128]{1,0:T(1,128)}', space=vmem, size = 0x12000, scoped, tag = 'internal scratch']
  %s0 = inlined_call_operand.hbm [shape: f32[2,8,128], index: 0, kind: input, shape index: {}]
  %s1 = inlined_call_operand.vmem [shape: f32[2,1,1], index: 1, kind: input, shape index: {}]
  %s2 = inlined_call_operand.hbm [shape: f32[2,8,128], index: 2, kind: output, shape index: {}]
  %s3 = sld [smem:[#allocation0]]
  $region22: #{tpu_custom_call.1} parent=0
    _
  %s5 = ssub.s32 1, %s3
  %s6 = scalar_select 0, %s5, %s3
  $region1: #{tpu_custom_call.1} parent=0
    #allocation2 [shape = 'u8[8192]{0}', space=vmem, size = 0x2000, scoped, tag = 'input window, operand 0, single buffered']
    #allocation3 [shape = 's32[1]{0}', space=sflag, size = 0x4, scoped, tag = 'scoped memory for tpu_custom_call.1']
    #allocation4 [shape = 's32[1]{0}', space=sflag, size = 0x4, scoped, tag = 'scoped memory for tpu_custom_call.1']
    #allocation5 [shape = 'u8[8192]{0}', space=vmem, size = 0x2000, scoped, tag = 'output window, operand 0, single buffered']
    %7 = vsyncpa [#allocation3], 0
    %8 = vsyncpa [#allocation4], 0
    // Predicated region
    $region2: #{tpu_custom_call.1} parent=1 // pred_check
      _
    $region3: #{tpu_custom_call.1} parent=1 // pred_check_branch
      %10 = sbr.rel (0) target = $region5
    $region4: #{tpu_custom_call.1} parent=1 // pred_region
      %s12 = ssub.s32 256, 256
      %13 = vsyncadd [#allocation3], %s12
      %s14 = sshll.u32 [#allocation2], 4
      %s15 = int_to_ptr.vmem [resolvable:$true] %s14
      %20 = dma.hbm_to_vmem [thread:$0]  %s0, 256, %s15, [#allocation3], 128, 128, 8
    $region5: #{tpu_custom_call.1} parent=1 // pred_fallthru
      _
    // Predicated region
    $region6: #{tpu_custom_call.1} parent=1 // pred_check
      _
    $region7: #{tpu_custom_call.1} parent=1 // pred_check_branch
      %22 = sbr.rel (0) target = $region9
    $region8: #{tpu_custom_call.1} parent=1 // pred_region
      _
    $region9: #{tpu_custom_call.1} parent=1 // pred_fallthru
      _
    // Predicated region
    $region10: #{tpu_custom_call.1} parent=1 // pred_check
      _
    $region11: #{tpu_custom_call.1} parent=1 // pred_check_branch
      %24 = sbr.rel (0) target = $region13
    $region12: #{tpu_custom_call.1} parent=1 // pred_region
      %25 = dma.done [#allocation3], 256
    $region13: #{tpu_custom_call.1} parent=1 // pred_fallthru
      _
    %v26 = vld [vmem:[%s1] sm:$0x1]
    %v27 = vld [vmem:[%s1 + $0x1] sm:$0x1]
    %v28 = vld [vmem:[#allocation2] sm:$0xff]
    %v29 = vld [vmem:[#allocation2 + $0x8] sm:$0xff]
    %v32 = vlaneseq
    %v33 = vshrl.u32 %v32, 7
    %v34 = vsub.s32 0, %v33
    %v35 = vrot.slane %v26, %v34
    %v36 = vlaneseq
    %v37 = vshrl.u32 %v36, 7
    %v38 = vsub.s32 0, %v37
    %v39 = vrot.slane %v27, %v38
    %40 = vset.pattern.permute.xlu0 0
    %41 = vperm.xlu0 %40, %v35
    %v42 = vpop.permute.xlu0 %41
    %44 = vset.pattern.permute.xlu0 0
    %45 = vperm.xlu0 %44, %v39
    %v46 = vpop.permute.xlu0 %45
    %v48 = vmul.f32 %v28, %v42
    %v49 = vmul.f32 %v29, %v46
    %50 = vst [vmem:[#allocation5] sm:$0xff] %v48
    %51 = vst [vmem:[#allocation5 + $0x8] sm:$0xff] %v49
    // Predicated region
    $region14: #{tpu_custom_call.1} parent=1 // pred_check
      _
    $region15: #{tpu_custom_call.1} parent=1 // pred_check_branch
      %53 = sbr.rel (0) target = $region17
    $region16: #{tpu_custom_call.1} parent=1 // pred_region
      %s55 = ssub.s32 256, 256
      %56 = vsyncadd [#allocation4], %s55
      %s57 = sshll.u32 [#allocation5], 4
      %s58 = int_to_ptr.vmem [resolvable:$true] %s57
      %63 = dma.vmem_to_hbm [thread:$0]  %s58, 256, %s2, [#allocation4], 128, 128, 8
    $region17: #{tpu_custom_call.1} parent=1 // pred_fallthru
      _
    // Predicated region
    $region18: #{tpu_custom_call.1} parent=1 // pred_check
      _
    $region19: #{tpu_custom_call.1} parent=1 // pred_check_branch
      %65 = sbr.rel (0) target = $region21
    $region20: #{tpu_custom_call.1} parent=1 // pred_region
      %66 = dma.done [#allocation4], 256
    $region21: #{tpu_custom_call.1} parent=1 // pred_fallthru
      _
    %67 = vsyncpa [#allocation3], 1
    %68 = vsyncpa [#allocation4], 1

</llo_original>
